<compile_context>
chip_gen: v5e
topology: v5e:2x2
jax: 0.10.0
libtpu: 0.0.40
codegen_flags: <defaults>
</compile_context>

<pallas_src>
import jax
import jax.numpy as jnp
from jax.experimental import pallas as pl
from jax.experimental.pallas import tpu as pltpu


def _gelu_exact(x):
    # matches torch.nn.GELU() default (erf form)
    return 0.5 * x * (1.0 + jax.lax.erf(x * (1.0 / jnp.sqrt(2.0)).astype(x.dtype)))


def _ddi_out_kernel(r1_ref, r2_ref, w1_ref, b1_ref, w2_ref, b2_ref, o_ref):
    F = r1_ref.shape[1]
    # In-kernel bf16 cast (VPU) -> MXU; f32 accumulation.
    r1 = r1_ref[...].astype(jnp.bfloat16)
    r2 = r2_ref[...].astype(jnp.bfloat16)
    # concat(r1, r2) @ W1 == r1 @ W1[:F] + r2 @ W1[F:]   (no in-kernel concat)
    h = jnp.dot(r1, w1_ref[:F, :], preferred_element_type=jnp.float32)
    h = h + jnp.dot(r2, w1_ref[F:, :], preferred_element_type=jnp.float32)
    h = h + b1_ref[...]                       # (TB, D) + (1, D), f32
    h = _gelu_exact(h)                        # exact erf GELU in f32 (EUP)
    # Second Linear has a single output column: elementwise multiply (VPU) +
    # lane reduction (XLU) instead of a 1-lane-wide MXU matmul.
    o = jnp.sum(h * w2_ref[...], axis=-1, keepdims=True) + b2_ref[0]
    o_ref[...] = o.astype(o_ref.dtype)


def _round_up(x, m):
    return ((x + m - 1) // m) * m


def phar_ddi_interaction(molecules_repr_1, molecules_repr_2, params, *, block_b=512):
    """Pallas forward: concat + 2-layer MLP predictor (`embedding_model.out`)."""
    w1, b1, w2, b2 = params           # w1: (2F, D), b1: (D,), w2: (D, 1), b2: (1,)
    B, F = molecules_repr_1.shape
    D = w1.shape[1]

    r1 = molecules_repr_1.astype(jnp.float32)   # read f32 directly, cast in-kernel
    r2 = molecules_repr_2.astype(jnp.float32)
    w1_bf = w1.astype(jnp.bfloat16)             # tiny, resident; halve its DMA
    b1_row = b1.reshape(1, D).astype(jnp.float32)
    w2_row = w2.reshape(1, D).astype(jnp.float32)  # row vector for lane reduction
    b2_s = b2.reshape(1).astype(jnp.float32)       # scalar, lives in SMEM

    # Batch tiling: TB rows per grid step (f32 sublane tiling -> multiple of 8),
    # weights resident in VMEM across all steps.  Ragged last tile handled by
    # Pallas' uneven-grid padding (no jnp.pad copy).
    tb = min(block_b, _round_up(B, 8))
    grid = (pl.cdiv(B, tb),)

    act_spec = pl.BlockSpec((tb, F), lambda i: (i, 0))
    resident = lambda i: (0, 0)

    cost = pl.CostEstimate(
        flops=2 * B * (2 * F * D + D),
        transcendentals=B * D,
        bytes_accessed=(2 * B * F * 4            # f32 activations
                        + 2 * F * D * 2          # bf16 W1
                        + 2 * D * 4 + 4          # b1, w2 row, b2
                        + B * 4),                # f32 output
    )

    out = pl.pallas_call(
        _ddi_out_kernel,
        out_shape=jax.ShapeDtypeStruct((B, 1), jnp.float32),
        grid=grid,
        in_specs=[
            act_spec,                                          # r1 tile
            act_spec,                                          # r2 tile
            pl.BlockSpec((2 * F, D), resident),                # W1 (both halves)
            pl.BlockSpec((1, D), resident),                    # b1
            pl.BlockSpec((1, D), resident),                    # w2 row
            pl.BlockSpec(memory_space=pltpu.MemorySpace.SMEM), # b2 scalar
        ],
        out_specs=pl.BlockSpec((tb, 1), lambda i: (i, 0)),
        compiler_params=pltpu.CompilerParams(
            dimension_semantics=("parallel",)),                # v7x: 2 TCs share batch
        cost_estimate=cost,
    )(r1, r2, w1_bf, b1_row, w2_row, b2_s)

    return out


def init_out_predictor_params(key, d_g_feats):
    """Deterministic init matching get_predictor(..., n_layers=2) + init_params:
    Linear weights ~ N(0, 0.02), biases = 0. Stored as (in, out) = W.T."""
    d_in = 2 * (d_g_feats * 3)
    k1, k2 = jax.random.split(key)
    w1 = 0.02 * jax.random.normal(k1, (d_in, d_g_feats), dtype=jnp.float32)
    b1 = jnp.zeros((d_g_feats,), dtype=jnp.float32)
    w2 = 0.02 * jax.random.normal(k2, (d_g_feats, 1), dtype=jnp.float32)
    b2 = jnp.zeros((1,), dtype=jnp.float32)
    return (w1, b1, w2, b2)


def reference_forward(r1, r2, params):
    w1, b1, w2, b2 = params
    x = jnp.concatenate([r1, r2], axis=1)
    h = _gelu_exact(x @ w1 + b1)
    return h @ w2 + b2


if __name__ == "__main__":
    key = jax.random.PRNGKey(0)
    k_r1, k_r2, k_params = jax.random.split(key, 3)

    B = 8            # batch of drug pairs (small test size)
    d_g_feats = 128  # config['d_g_feats'] (TPU-lane aligned)
    F = 3 * d_g_feats

    # molecule representations (stand-in for embedding_model.get_ddi_feat outputs)
    molecules_repr_1 = jax.random.normal(k_r1, (B, F), dtype=jnp.float32)
    molecules_repr_2 = jax.random.normal(k_r2, (B, F), dtype=jnp.float32)

    params = init_out_predictor_params(k_params, d_g_feats)

    interaction = phar_ddi_interaction(molecules_repr_1, molecules_repr_2, params)
    interaction = jax.block_until_ready(interaction)
    assert interaction.shape == (B, 1)

    # matched reference: same bf16 rounding of r1/r2/W1 as the kernel, f32 math
    w1, b1, w2, b2 = params
    matched = reference_forward(
        molecules_repr_1.astype(jnp.bfloat16).astype(jnp.float32),
        molecules_repr_2.astype(jnp.bfloat16).astype(jnp.float32),
        (w1.astype(jnp.bfloat16).astype(jnp.float32), b1, w2, b2),
    )
    assert jnp.allclose(interaction, matched, atol=1e-3, rtol=1e-3)

    # loose check against the full-f32 PyTorch-equivalent math (bf16 rounding slack)
    ref = reference_forward(molecules_repr_1, molecules_repr_2, params)
    assert jnp.allclose(interaction, ref, atol=3e-2, rtol=3e-2)

    print("KERNEL_OK")
</pallas_src>

<mosaic_0001>
module attributes {stable_mosaic.version = 11 : i64} {
  func.func @_ddi_out_kernel(%arg0: i32, %arg1: memref<8x384xf32, #tpu.memory_space<vmem>>, %arg2: memref<8x384xf32, #tpu.memory_space<vmem>>, %arg3: memref<768x128xbf16, #tpu.memory_space<vmem>>, %arg4: memref<1x128xf32, #tpu.memory_space<vmem>>, %arg5: memref<1x128xf32, #tpu.memory_space<vmem>>, %arg6: memref<1xf32, #tpu.memory_space<smem>>, %arg7: memref<8x1xf32, #tpu.memory_space<vmem>>) attributes {dimension_semantics = [#tpu.dimension_semantics<parallel>], iteration_bounds = array<i64: 1>, scalar_prefetch = 0 : i64, scratch_operands = 0 : i64, tpu.core_type = #tpu.core_type<tc>, window_params = [{transform_indices = @transform_0, window_bounds = array<i64: 8, 384>}, {transform_indices = @transform_1, window_bounds = array<i64: 8, 384>}, {pipeline_mode = #tpu.pipeline_mode<synchronous>, transform_indices = @transform_2, window_bounds = array<i64: 768, 128>}, {pipeline_mode = #tpu.pipeline_mode<synchronous>, transform_indices = @transform_3, window_bounds = array<i64: 1, 128>}, {pipeline_mode = #tpu.pipeline_mode<synchronous>, transform_indices = @transform_4, window_bounds = array<i64: 1, 128>}, {transform_indices = @transform_5, window_bounds = array<i64: 1>}, {transform_indices = @transform_6, window_bounds = array<i64: 8, 1>}]} {
    %c0 = arith.constant 0 : index
    %c0_0 = arith.constant 0 : index
    %0 = vector.load %arg1[%c0, %c0_0] : memref<8x384xf32, #tpu.memory_space<vmem>>, vector<8x384xf32>
    %1 = arith.truncf %0 : vector<8x384xf32> to vector<8x384xbf16>
    %c0_1 = arith.constant 0 : index
    %c0_2 = arith.constant 0 : index
    %2 = vector.load %arg2[%c0_1, %c0_2] : memref<8x384xf32, #tpu.memory_space<vmem>>, vector<8x384xf32>
    %3 = arith.truncf %2 : vector<8x384xf32> to vector<8x384xbf16>
    %c0_3 = arith.constant 0 : index
    %c0_4 = arith.constant 0 : index
    %4 = vector.load %arg3[%c0_3, %c0_4] : memref<768x128xbf16, #tpu.memory_space<vmem>>, vector<384x128xbf16>
    %cst = arith.constant dense<0.000000e+00> : vector<8x128xf32>
    %5 = tpu.matmul %1, %4, %cst {dimension_numbers = #tpu.dot_dimension_numbers<[1], [0], [0], [1], [0, 0, 1, 1], [], []>} : vector<8x384xbf16>, vector<384x128xbf16>, vector<8x128xf32> -> vector<8x128xf32>
    %c384 = arith.constant 384 : index
    %c0_5 = arith.constant 0 : index
    %6 = vector.load %arg3[%c384, %c0_5] : memref<768x128xbf16, #tpu.memory_space<vmem>>, vector<384x128xbf16>
    %cst_6 = arith.constant dense<0.000000e+00> : vector<8x128xf32>
    %7 = tpu.matmul %3, %6, %cst_6 {dimension_numbers = #tpu.dot_dimension_numbers<[1], [0], [0], [1], [0, 0, 1, 1], [], []>} : vector<8x384xbf16>, vector<384x128xbf16>, vector<8x128xf32> -> vector<8x128xf32>
    %8 = arith.addf %5, %7 : vector<8x128xf32>
    %c0_7 = arith.constant 0 : index
    %c0_8 = arith.constant 0 : index
    %9 = vector.load %arg4[%c0_7, %c0_8] : memref<1x128xf32, #tpu.memory_space<vmem>>, vector<1x128xf32>
    %10 = vector.broadcast %9 : vector<1x128xf32> to vector<8x128xf32>
    %11 = arith.addf %8, %10 : vector<8x128xf32>
    %cst_9 = arith.constant 5.000000e-01 : f32
    %12 = vector.broadcast %cst_9 : f32 to vector<8x128xf32>
    %13 = arith.mulf %12, %11 : vector<8x128xf32>
    %cst_10 = arith.constant 2.000000e+00 : f32
    %14 = math.sqrt %cst_10 : f32
    %cst_11 = arith.constant 1.000000e+00 : f32
    %15 = arith.divf %cst_11, %14 : f32
    %16 = vector.broadcast %15 : f32 to vector<8x128xf32>
    %17 = arith.mulf %11, %16 : vector<8x128xf32>
    %18 = math.erf %17 : vector<8x128xf32>
    %cst_12 = arith.constant 1.000000e+00 : f32
    %19 = vector.broadcast %cst_12 : f32 to vector<8x128xf32>
    %20 = arith.addf %19, %18 : vector<8x128xf32>
    %21 = arith.mulf %13, %20 : vector<8x128xf32>
    %c0_13 = arith.constant 0 : index
    %c0_14 = arith.constant 0 : index
    %22 = vector.load %arg5[%c0_13, %c0_14] : memref<1x128xf32, #tpu.memory_space<vmem>>, vector<1x128xf32>
    %23 = vector.broadcast %22 : vector<1x128xf32> to vector<8x128xf32>
    %24 = arith.mulf %21, %23 : vector<8x128xf32>
    %cst_15 = arith.constant dense<0.000000e+00> : vector<8xf32>
    %25 = vector.multi_reduction <add>, %24, %cst_15 [1] : vector<8x128xf32> to vector<8xf32>
    %26 = vector.shape_cast %25 : vector<8xf32> to vector<8x1xf32>
    %c0_16 = arith.constant 0 : index
    %27 = memref.load %arg6[%c0_16] : memref<1xf32, #tpu.memory_space<smem>>
    %28 = vector.broadcast %27 : f32 to vector<8x1xf32>
    %29 = arith.addf %26, %28 : vector<8x1xf32>
    %c0_17 = arith.constant 0 : index
    %c0_18 = arith.constant 0 : index
    %30 = vector.load %arg7[%c0_17, %c0_18] : memref<8x1xf32, #tpu.memory_space<vmem>>, vector<8x1xf32>
    tpu.vector_store %arg7[%c0_17, %c0_18], %29 {strides = array<i32>} : memref<8x1xf32, #tpu.memory_space<vmem>>, vector<8x1xf32>,
    return
  }
  func.func @transform_0(%arg0: i32) -> (i32, i32) {
    %c0_i32 = arith.constant 0 : i32
    %c0_i32_0 = arith.constant 0 : i32
    return %arg0, %c0_i32 : i32, i32
  }
  func.func @transform_1(%arg0: i32) -> (i32, i32) {
    %c0_i32 = arith.constant 0 : i32
    %c0_i32_0 = arith.constant 0 : i32
    return %arg0, %c0_i32 : i32, i32
  }
  func.func @transform_2(%arg0: i32) -> (i32, i32) {
    %c0_i32 = arith.constant 0 : i32
    %c0_i32_0 = arith.constant 0 : i32
    %c0_i32_1 = arith.constant 0 : i32
    return %c0_i32, %c0_i32_0 : i32, i32
  }
  func.func @transform_3(%arg0: i32) -> (i32, i32) {
    %c0_i32 = arith.constant 0 : i32
    %c0_i32_0 = arith.constant 0 : i32
    %c0_i32_1 = arith.constant 0 : i32
    return %c0_i32, %c0_i32_0 : i32, i32
  }
  func.func @transform_4(%arg0: i32) -> (i32, i32) {
    %c0_i32 = arith.constant 0 : i32
    %c0_i32_0 = arith.constant 0 : i32
    %c0_i32_1 = arith.constant 0 : i32
    return %c0_i32, %c0_i32_0 : i32, i32
  }
  func.func @transform_5(%arg0: i32) -> i32 {
    %c0_i32 = arith.constant 0 : i32
    %c0_i32_0 = arith.constant 0 : i32
    return %c0_i32 : i32
  }
  func.func @transform_6(%arg0: i32) -> (i32, i32) {
    %c0_i32 = arith.constant 0 : i32
    %c0_i32_0 = arith.constant 0 : i32
    return %arg0, %c0_i32 : i32, i32
  }
}

</mosaic_0001>

<llo_original>
// kernel: tpu_custom_call.1
$region0: #{tpu_custom_call.1}
  #allocation0 [shape = 'u32[]', space=smem, size = 0x4, offset = 0x4, fixed_abs, tag = 'smem constant byte address 0x4 - core index']
  #allocation1 [shape = 'u32[72,128]{1,0:T(1,128)}', space=vmem, size = 0x9000, scoped, tag = 'internal scratch']
  #allocation2 [shape = 'f32[1]{0:T(128)S(6)}', space=smem, size = 0x200, scoped, tag = 'scoped memory for tpu_custom_call.1']
  %s0 = inlined_call_operand.hbm [shape: f32[8,384], index: 0, kind: input, shape index: {}]
  %s1 = inlined_call_operand.hbm [shape: f32[8,384], index: 1, kind: input, shape index: {}]
  %s2 = inlined_call_operand.hbm [shape: bf16[768,128], index: 2, kind: input, shape index: {}]
  %s3 = inlined_call_operand.vmem [shape: f32[1,128], index: 3, kind: input, shape index: {}]
  %s4 = inlined_call_operand.vmem [shape: f32[1,128], index: 4, kind: input, shape index: {}]
  %s5 = inlined_call_operand.<no memory space> [shape: f32[1], index: 5, kind: input, shape index: {}]
  %s6 = inlined_call_operand.vmem [shape: f32[8,1], index: 6, kind: output, shape index: {}]
  %s7 = sld [smem:[#allocation0]]
  $region46: #{tpu_custom_call.1} parent=0
    _
  %s9 = ssub.s32 1, %s7
  %s10 = scalar_select 0, %s9, %s7
  %11 = sst [smem:[#allocation2]] %s5
  $region1: #{tpu_custom_call.1} parent=0
    #allocation3 [shape = 'u8[12288]{0}', space=vmem, size = 0x3000, scoped, tag = 'input window, operand 0, single buffered']
    #allocation4 [shape = 's32[1]{0}', space=sflag, size = 0x4, scoped, tag = 'scoped memory for tpu_custom_call.1']
    #allocation5 [shape = 'u8[12288]{0}', space=vmem, size = 0x3000, scoped, tag = 'input window, operand 1, single buffered']
    #allocation6 [shape = 's32[1]{0}', space=sflag, size = 0x4, scoped, tag = 'scoped memory for tpu_custom_call.1']
    #allocation7 [shape = 'u8[196608]{0}', space=vmem, size = 0x30000, scoped, tag = 'input window, operand 2, single buffered']
    %12 = vsyncpa [#allocation4], 0
    %13 = vsyncpa [#allocation6], 0
    // Predicated region
    $region2: #{tpu_custom_call.1} parent=1 // pred_check
      _
    $region3: #{tpu_custom_call.1} parent=1 // pred_check_branch
      %15 = sbr.rel (0) target = $region5
    $region4: #{tpu_custom_call.1} parent=1 // pred_region
      %17 = vsyncadd [#allocation4], 0
      %s19 = sshll.u32 %s0, 4
      %s20 = int_to_ptr.hbm [resolvable:$true] %s19
      %s21 = sshll.u32 [#allocation3], 4
      %s22 = int_to_ptr.vmem [resolvable:$true] %s21
      %24 = dma.hbm_to_vmem [thread:$0]  %s20, 384, %s22, [#allocation4]
    $region5: #{tpu_custom_call.1} parent=1 // pred_fallthru
      _
    // Predicated region
    $region6: #{tpu_custom_call.1} parent=1 // pred_check
      _
    $region7: #{tpu_custom_call.1} parent=1 // pred_check_branch
      %26 = sbr.rel (0) target = $region9
    $region8: #{tpu_custom_call.1} parent=1 // pred_region
      %28 = vsyncadd [#allocation6], 0
      %s30 = sshll.u32 %s1, 4
      %s31 = int_to_ptr.hbm [resolvable:$true] %s30
      %s32 = sshll.u32 [#allocation5], 4
      %s33 = int_to_ptr.vmem [resolvable:$true] %s32
      %35 = dma.hbm_to_vmem [thread:$0]  %s31, 384, %s33, [#allocation6]
    $region9: #{tpu_custom_call.1} parent=1 // pred_fallthru
      _
    // Predicated region
    $region10: #{tpu_custom_call.1} parent=1 // pred_check
      _
    $region11: #{tpu_custom_call.1} parent=1 // pred_check_branch
      %37 = sbr.rel (0) target = $region13
    $region12: #{tpu_custom_call.1} parent=1 // pred_region
      %39 = vsyncadd [#allocation6], 0
      %s40 = sshll.u32 %s2, 4
      %s41 = int_to_ptr.hbm [resolvable:$true] %s40
      %s42 = sshll.u32 [#allocation7], 4
      %s43 = int_to_ptr.vmem [resolvable:$true] %s42
      %48 = dma.hbm_to_vmem [thread:$0]  %s41, 6144, %s43, [#allocation6], 64, 64, 4
    $region13: #{tpu_custom_call.1} parent=1 // pred_fallthru
      _
    // Predicated region
    $region14: #{tpu_custom_call.1} parent=1 // pred_check
      _
    $region15: #{tpu_custom_call.1} parent=1 // pred_check_branch
      %50 = sbr.rel (0) target = $region17
    $region16: #{tpu_custom_call.1} parent=1 // pred_region
      _
    $region17: #{tpu_custom_call.1} parent=1 // pred_fallthru
      _
    // Predicated region
    $region18: #{tpu_custom_call.1} parent=1 // pred_check
      _
    $region19: #{tpu_custom_call.1} parent=1 // pred_check_branch
      %52 = sbr.rel (0) target = $region21
    $region20: #{tpu_custom_call.1} parent=1 // pred_region
      _
    $region21: #{tpu_custom_call.1} parent=1 // pred_fallthru
      _
    // Predicated region
    $region22: #{tpu_custom_call.1} parent=1 // pred_check
      _
    $region23: #{tpu_custom_call.1} parent=1 // pred_check_branch
      %54 = sbr.rel (0) target = $region25
    $region24: #{tpu_custom_call.1} parent=1 // pred_region
      _
    $region25: #{tpu_custom_call.1} parent=1 // pred_fallthru
      _
    // Predicated region
    $region26: #{tpu_custom_call.1} parent=1 // pred_check
      _
    $region27: #{tpu_custom_call.1} parent=1 // pred_check_branch
      %56 = sbr.rel (0) target = $region29
    $region28: #{tpu_custom_call.1} parent=1 // pred_region
      %58 = dma.done [#allocation4], 384
    $region29: #{tpu_custom_call.1} parent=1 // pred_fallthru
      _
    // Predicated region
    $region30: #{tpu_custom_call.1} parent=1 // pred_check
      _
    $region31: #{tpu_custom_call.1} parent=1 // pred_check_branch
      %60 = sbr.rel (0) target = $region33
    $region32: #{tpu_custom_call.1} parent=1 // pred_region
      %62 = dma.done [#allocation6], 384
    $region33: #{tpu_custom_call.1} parent=1 // pred_fallthru
      _
    // Predicated region
    $region34: #{tpu_custom_call.1} parent=1 // pred_check
      _
    $region35: #{tpu_custom_call.1} parent=1 // pred_check_branch
      %64 = sbr.rel (0) target = $region37
    $region36: #{tpu_custom_call.1} parent=1 // pred_region
      %66 = dma.done [#allocation6], 6144
    $region37: #{tpu_custom_call.1} parent=1 // pred_fallthru
      _
    %v67 = vld [vmem:[#allocation3] sm:$0xff]
    %v68 = vld [vmem:[#allocation3 + $0x8] sm:$0xff]
    %v69 = vld [vmem:[#allocation3 + $0x10] sm:$0xff]
    %v70 = vpack.c.bf16 %v67, %v67
    %v71 = vpack.c.bf16 %v68, %v68
    %v72 = vpack.c.bf16 %v69, %v69
    %v73 = vld [vmem:[#allocation5] sm:$0xff]
    %v74 = vld [vmem:[#allocation5 + $0x8] sm:$0xff]
    %v75 = vld [vmem:[#allocation5 + $0x10] sm:$0xff]
    %v76 = vpack.c.bf16 %v73, %v73
    %v77 = vpack.c.bf16 %v74, %v74
    %v78 = vpack.c.bf16 %v75, %v75
    %v79 = vld [vmem:[#allocation7] sm:$0xf]
    %v80 = vld [vmem:[#allocation7 + $0x4] sm:$0xf]
    %v81 = vld [vmem:[#allocation7 + $0x8] sm:$0xf]
    %v82 = vld [vmem:[#allocation7 + $0xc] sm:$0xf]
    %v83 = vld [vmem:[#allocation7 + $0x10] sm:$0xf]
    %v84 = vld [vmem:[#allocation7 + $0x14] sm:$0xf]
    %v85 = vld [vmem:[#allocation7 + $0x18] sm:$0xf]
    %v86 = vld [vmem:[#allocation7 + $0x1c] sm:$0xf]
    %v87 = vld [vmem:[#allocation7 + $0x20] sm:$0xf]
    %v88 = vld [vmem:[#allocation7 + $0x24] sm:$0xf]
    %v89 = vld [vmem:[#allocation7 + $0x28] sm:$0xf]
    %v90 = vld [vmem:[#allocation7 + $0x2c] sm:$0xf]
    %v91 = vld [vmem:[#allocation7 + $0x30] sm:$0xf]
    %v92 = vld [vmem:[#allocation7 + $0x34] sm:$0xf]
    %v93 = vld [vmem:[#allocation7 + $0x38] sm:$0xf]
    %v94 = vld [vmem:[#allocation7 + $0x3c] sm:$0xf]
    %v95 = vld [vmem:[#allocation7 + $0x40] sm:$0xf]
    %v96 = vld [vmem:[#allocation7 + $0x44] sm:$0xf]
    %v97 = vld [vmem:[#allocation7 + $0x48] sm:$0xf]
    %v98 = vld [vmem:[#allocation7 + $0x4c] sm:$0xf]
    %v99 = vld [vmem:[#allocation7 + $0x50] sm:$0xf]
    %v100 = vld [vmem:[#allocation7 + $0x54] sm:$0xf]
    %v101 = vld [vmem:[#allocation7 + $0x58] sm:$0xf]
    %v102 = vld [vmem:[#allocation7 + $0x5c] sm:$0xf]
    %v103 = vld [vmem:[#allocation7 + $0x60] sm:$0xf]
    %v104 = vld [vmem:[#allocation7 + $0x64] sm:$0xf]
    %v105 = vld [vmem:[#allocation7 + $0x68] sm:$0xf]
    %v106 = vld [vmem:[#allocation7 + $0x6c] sm:$0xf]
    %v107 = vld [vmem:[#allocation7 + $0x70] sm:$0xf]
    %v108 = vld [vmem:[#allocation7 + $0x74] sm:$0xf]
    %v109 = vld [vmem:[#allocation7 + $0x78] sm:$0xf]
    %v110 = vld [vmem:[#allocation7 + $0x7c] sm:$0xf]
    %v111 = vld [vmem:[#allocation7 + $0x80] sm:$0xf]
    %v112 = vld [vmem:[#allocation7 + $0x84] sm:$0xf]
    %v113 = vld [vmem:[#allocation7 + $0x88] sm:$0xf]
    %v114 = vld [vmem:[#allocation7 + $0x8c] sm:$0xf]
    %v115 = vld [vmem:[#allocation7 + $0x90] sm:$0xf]
    %v116 = vld [vmem:[#allocation7 + $0x94] sm:$0xf]
    %v117 = vld [vmem:[#allocation7 + $0x98] sm:$0xf]
    %v118 = vld [vmem:[#allocation7 + $0x9c] sm:$0xf]
    %v119 = vld [vmem:[#allocation7 + $0xa0] sm:$0xf]
    %v120 = vld [vmem:[#allocation7 + $0xa4] sm:$0xf]
    %v121 = vld [vmem:[#allocation7 + $0xa8] sm:$0xf]
    %v122 = vld [vmem:[#allocation7 + $0xac] sm:$0xf]
    %v123 = vld [vmem:[#allocation7 + $0xb0] sm:$0xf]
    %v124 = vld [vmem:[#allocation7 + $0xb4] sm:$0xf]
    %v125 = vld [vmem:[#allocation7 + $0xb8] sm:$0xf]
    %v126 = vld [vmem:[#allocation7 + $0xbc] sm:$0xf]
    %v127 = vld [vmem:[#allocation7 + $0xc0] sm:$0xf]
    %v128 = vld [vmem:[#allocation7 + $0xc4] sm:$0xf]
    %v129 = vld [vmem:[#allocation7 + $0xc8] sm:$0xf]
    %v130 = vld [vmem:[#allocation7 + $0xcc] sm:$0xf]
    %v131 = vld [vmem:[#allocation7 + $0xd0] sm:$0xf]
    %v132 = vld [vmem:[#allocation7 + $0xd4] sm:$0xf]
    %v133 = vld [vmem:[#allocation7 + $0xd8] sm:$0xf]
    %v134 = vld [vmem:[#allocation7 + $0xdc] sm:$0xf]
    %v135 = vld [vmem:[#allocation7 + $0xe0] sm:$0xf]
    %v136 = vld [vmem:[#allocation7 + $0xe4] sm:$0xf]
    %v137 = vld [vmem:[#allocation7 + $0xe8] sm:$0xf]
    %v138 = vld [vmem:[#allocation7 + $0xec] sm:$0xf]
    %v139 = vld [vmem:[#allocation7 + $0xf0] sm:$0xf]
    %v140 = vld [vmem:[#allocation7 + $0xf4] sm:$0xf]
    %v141 = vld [vmem:[#allocation7 + $0xf8] sm:$0xf]
    %v142 = vld [vmem:[#allocation7 + $0xfc] sm:$0xf]
    %v143 = vld [vmem:[#allocation7 + $0x100] sm:$0xf]
    %v144 = vld [vmem:[#allocation7 + $0x104] sm:$0xf]
    %v145 = vld [vmem:[#allocation7 + $0x108] sm:$0xf]
    %v146 = vld [vmem:[#allocation7 + $0x10c] sm:$0xf]
    %v147 = vld [vmem:[#allocation7 + $0x110] sm:$0xf]
    %v148 = vld [vmem:[#allocation7 + $0x114] sm:$0xf]
    %v149 = vld [vmem:[#allocation7 + $0x118] sm:$0xf]
    %v150 = vld [vmem:[#allocation7 + $0x11c] sm:$0xf]
    %v151 = vld [vmem:[#allocation7 + $0x120] sm:$0xf]
    %v152 = vld [vmem:[#allocation7 + $0x124] sm:$0xf]
    %v153 = vld [vmem:[#allocation7 + $0x128] sm:$0xf]
    %v154 = vld [vmem:[#allocation7 + $0x12c] sm:$0xf]
    %v155 = vld [vmem:[#allocation7 + $0x130] sm:$0xf]
    %v156 = vld [vmem:[#allocation7 + $0x134] sm:$0xf]
    %v157 = vld [vmem:[#allocation7 + $0x138] sm:$0xf]
    %v158 = vld [vmem:[#allocation7 + $0x13c] sm:$0xf]
    %v159 = vld [vmem:[#allocation7 + $0x140] sm:$0xf]
    %v160 = vld [vmem:[#allocation7 + $0x144] sm:$0xf]
    %v161 = vld [vmem:[#allocation7 + $0x148] sm:$0xf]
    %v162 = vld [vmem:[#allocation7 + $0x14c] sm:$0xf]
    %v163 = vld [vmem:[#allocation7 + $0x150] sm:$0xf]
    %v164 = vld [vmem:[#allocation7 + $0x154] sm:$0xf]
    %v165 = vld [vmem:[#allocation7 + $0x158] sm:$0xf]
    %v166 = vld [vmem:[#allocation7 + $0x15c] sm:$0xf]
    %v167 = vld [vmem:[#allocation7 + $0x160] sm:$0xf]
    %v168 = vld [vmem:[#allocation7 + $0x164] sm:$0xf]
    %v169 = vld [vmem:[#allocation7 + $0x168] sm:$0xf]
    %v170 = vld [vmem:[#allocation7 + $0x16c] sm:$0xf]
    %v171 = vld [vmem:[#allocation7 + $0x170] sm:$0xf]
    %v172 = vld [vmem:[#allocation7 + $0x174] sm:$0xf]
    %v173 = vld [vmem:[#allocation7 + $0x178] sm:$0xf]
    %v174 = vld [vmem:[#allocation7 + $0x17c] sm:$0xf]
    %v223 = vunpack.c.l.b16 %v127
    %v224 = vunpack.c.l.b16 %v128
    %v225 = vunpack.c.l.b16 %v129
    %v226 = vunpack.c.l.b16 %v130
    %v227 = vunpack.c.l.b16 %v131
    %v228 = vunpack.c.l.b16 %v132
    %v229 = vunpack.c.l.b16 %v133
    %v230 = vunpack.c.l.b16 %v134
    %v231 = vunpack.c.l.b16 %v135
    %v232 = vunpack.c.l.b16 %v136
    %v233 = vunpack.c.l.b16 %v137
    %v234 = vunpack.c.l.b16 %v138
    %v235 = vunpack.c.l.b16 %v139
    %v236 = vunpack.c.l.b16 %v140
    %v237 = vunpack.c.l.b16 %v141
    %v238 = vunpack.c.l.b16 %v142
    %v239 = vunpack.c.l.b16 %v143
    %v240 = vunpack.c.l.b16 %v144
    %v241 = vunpack.c.l.b16 %v145
    %v242 = vunpack.c.l.b16 %v146
    %v243 = vunpack.c.l.b16 %v147
    %v244 = vunpack.c.l.b16 %v148
    %v245 = vunpack.c.l.b16 %v149
    %v246 = vunpack.c.l.b16 %v150
    %v247 = vunpack.c.l.b16 %v151
    %v248 = vunpack.c.l.b16 %v152
    %v249 = vunpack.c.l.b16 %v153
    %v250 = vunpack.c.l.b16 %v154
    %v251 = vunpack.c.l.b16 %v155
    %v252 = vunpack.c.l.b16 %v156
    %v253 = vunpack.c.l.b16 %v157
    %v254 = vunpack.c.l.b16 %v158
    %v255 = vunpack.c.l.b16 %v159
    %v256 = vunpack.c.l.b16 %v160
    %v257 = vunpack.c.l.b16 %v161
    %v258 = vunpack.c.l.b16 %v162
    %v259 = vunpack.c.l.b16 %v163
    %v260 = vunpack.c.l.b16 %v164
    %v261 = vunpack.c.l.b16 %v165
    %v262 = vunpack.c.l.b16 %v166
    %v263 = vunpack.c.l.b16 %v167
    %v264 = vunpack.c.l.b16 %v168
    %v265 = vunpack.c.l.b16 %v169
    %v266 = vunpack.c.l.b16 %v170
    %v267 = vunpack.c.l.b16 %v171
    %v268 = vunpack.c.l.b16 %v172
    %v269 = vunpack.c.l.b16 %v173
    %v270 = vunpack.c.l.b16 %v174
    %v271 = vpack.c.b16 %v224, %v223
    %v272 = vpack.c.b16 %v226, %v225
    %v273 = vpack.c.b16 %v228, %v227
    %v274 = vpack.c.b16 %v230, %v229
    %v275 = vpack.c.b16 %v232, %v231
    %v276 = vpack.c.b16 %v234, %v233
    %v277 = vpack.c.b16 %v236, %v235
    %v278 = vpack.c.b16 %v238, %v237
    %v279 = vpack.c.b16 %v240, %v239
    %v280 = vpack.c.b16 %v242, %v241
    %v281 = vpack.c.b16 %v244, %v243
    %v282 = vpack.c.b16 %v246, %v245
    %v283 = vpack.c.b16 %v248, %v247
    %v284 = vpack.c.b16 %v250, %v249
    %v285 = vpack.c.b16 %v252, %v251
    %v286 = vpack.c.b16 %v254, %v253
    %v287 = vpack.c.b16 %v256, %v255
    %v288 = vpack.c.b16 %v258, %v257
    %v289 = vpack.c.b16 %v260, %v259
    %v290 = vpack.c.b16 %v262, %v261
    %v291 = vpack.c.b16 %v264, %v263
    %v292 = vpack.c.b16 %v266, %v265
    %v293 = vpack.c.b16 %v268, %v267
    %v294 = vpack.c.b16 %v270, %v269
    %319 = vmatpush.bf16.msra.mxu0 %v278
    %320 = vmatpush.bf16.msra.mxu0 %v277
    %321 = vmatpush.bf16.msra.mxu0 %v276
    %322 = vmatpush.bf16.msra.mxu0 %v275
    %323 = vmatpush.bf16.msra.mxu0 %v274
    %324 = vmatpush.bf16.msra.mxu0 %v273
    %325 = vmatpush.bf16.msra.mxu0 %v272
    %326 = vmatpush.bf16.msra.mxu0 %v271
    %327 = vmatmul.bf16.gmra.mxu0 %v76
    %v328 = vpop.f32.mrf.mxu0
    %v329 = vadd.f32 0.0, %v328
    %v330 = vpop.f32.mrf.mxu0
    %331 = vdwg.mxu0
    %332 = vmatpush.bf16.msra.mxu0 %v286
    %333 = vmatpush.bf16.msra.mxu0 %v285
    %334 = vmatpush.bf16.msra.mxu0 %v284
    %335 = vmatpush.bf16.msra.mxu0 %v283
    %336 = vmatpush.bf16.msra.mxu0 %v282
    %337 = vmatpush.bf16.msra.mxu0 %v281
    %338 = vmatpush.bf16.msra.mxu0 %v280
    %339 = vmatpush.bf16.msra.mxu0 %v279
    %340 = vmatmul.bf16.gmra.mxu0 %v77
    %v341 = vpop.f32.mrf.mxu0
    %v342 = vadd.f32 %v329, %v341
    %v343 = vpop.f32.mrf.mxu0
    %344 = vdwg.mxu0
    %345 = vmatpush.bf16.msra.mxu0 %v294
    %346 = vmatpush.bf16.msra.mxu0 %v293
    %347 = vmatpush.bf16.msra.mxu0 %v292
    %348 = vmatpush.bf16.msra.mxu0 %v291
    %349 = vmatpush.bf16.msra.mxu0 %v290
    %350 = vmatpush.bf16.msra.mxu0 %v289
    %351 = vmatpush.bf16.msra.mxu0 %v288
    %352 = vmatpush.bf16.msra.mxu0 %v287
    %353 = vmatmul.bf16.gmra.mxu0 %v78
    %v354 = vpop.f32.mrf.mxu0
    %v355 = vadd.f32 %v342, %v354
    %v356 = vpop.f32.mrf.mxu0
    %357 = vdwg.mxu0
    %v406 = vunpack.c.l.b16 %v79
    %v407 = vunpack.c.l.b16 %v80
    %v408 = vunpack.c.l.b16 %v81
    %v409 = vunpack.c.l.b16 %v82
    %v410 = vunpack.c.l.b16 %v83
    %v411 = vunpack.c.l.b16 %v84
    %v412 = vunpack.c.l.b16 %v85
    %v413 = vunpack.c.l.b16 %v86
    %v414 = vunpack.c.l.b16 %v87
    %v415 = vunpack.c.l.b16 %v88
    %v416 = vunpack.c.l.b16 %v89
    %v417 = vunpack.c.l.b16 %v90
    %v418 = vunpack.c.l.b16 %v91
    %v419 = vunpack.c.l.b16 %v92
    %v420 = vunpack.c.l.b16 %v93
    %v421 = vunpack.c.l.b16 %v94
    %v422 = vunpack.c.l.b16 %v95
    %v423 = vunpack.c.l.b16 %v96
    %v424 = vunpack.c.l.b16 %v97
    %v425 = vunpack.c.l.b16 %v98
    %v426 = vunpack.c.l.b16 %v99
    %v427 = vunpack.c.l.b16 %v100
    %v428 = vunpack.c.l.b16 %v101
    %v429 = vunpack.c.l.b16 %v102
    %v430 = vunpack.c.l.b16 %v103
    %v431 = vunpack.c.l.b16 %v104
    %v432 = vunpack.c.l.b16 %v105
    %v433 = vunpack.c.l.b16 %v106
    %v434 = vunpack.c.l.b16 %v107
    %v435 = vunpack.c.l.b16 %v108
    %v436 = vunpack.c.l.b16 %v109
    %v437 = vunpack.c.l.b16 %v110
    %v438 = vunpack.c.l.b16 %v111
    %v439 = vunpack.c.l.b16 %v112
    %v440 = vunpack.c.l.b16 %v113
    %v441 = vunpack.c.l.b16 %v114
    %v442 = vunpack.c.l.b16 %v115
    %v443 = vunpack.c.l.b16 %v116
    %v444 = vunpack.c.l.b16 %v117
    %v445 = vunpack.c.l.b16 %v118
    %v446 = vunpack.c.l.b16 %v119
    %v447 = vunpack.c.l.b16 %v120
    %v448 = vunpack.c.l.b16 %v121
    %v449 = vunpack.c.l.b16 %v122
    %v450 = vunpack.c.l.b16 %v123
    %v451 = vunpack.c.l.b16 %v124
    %v452 = vunpack.c.l.b16 %v125
    %v453 = vunpack.c.l.b16 %v126
    %v454 = vpack.c.b16 %v407, %v406
    %v455 = vpack.c.b16 %v409, %v408
    %v456 = vpack.c.b16 %v411, %v410
    %v457 = vpack.c.b16 %v413, %v412
    %v458 = vpack.c.b16 %v415, %v414
    %v459 = vpack.c.b16 %v417, %v416
    %v460 = vpack.c.b16 %v419, %v418
    %v461 = vpack.c.b16 %v421, %v420
    %v462 = vpack.c.b16 %v423, %v422
    %v463 = vpack.c.b16 %v425, %v424
    %v464 = vpack.c.b16 %v427, %v426
    %v465 = vpack.c.b16 %v429, %v428
    %v466 = vpack.c.b16 %v431, %v430
    %v467 = vpack.c.b16 %v433, %v432
    %v468 = vpack.c.b16 %v435, %v434
    %v469 = vpack.c.b16 %v437, %v436
    %v470 = vpack.c.b16 %v439, %v438
    %v471 = vpack.c.b16 %v441, %v440
    %v472 = vpack.c.b16 %v443, %v442
    %v473 = vpack.c.b16 %v445, %v444
    %v474 = vpack.c.b16 %v447, %v446
    %v475 = vpack.c.b16 %v449, %v448
    %v476 = vpack.c.b16 %v451, %v450
    %v477 = vpack.c.b16 %v453, %v452
    %502 = vmatpush.bf16.msra.mxu0 %v461
    %503 = vmatpush.bf16.msra.mxu0 %v460
    %504 = vmatpush.bf16.msra.mxu0 %v459
    %505 = vmatpush.bf16.msra.mxu0 %v458
    %506 = vmatpush.bf16.msra.mxu0 %v457
    %507 = vmatpush.bf16.msra.mxu0 %v456
    %508 = vmatpush.bf16.msra.mxu0 %v455
    %509 = vmatpush.bf16.msra.mxu0 %v454
    %510 = vmatmul.bf16.gmra.mxu0 %v70
    %v511 = vpop.f32.mrf.mxu0
    %v512 = vadd.f32 %v355, %v511
    %v513 = vpop.f32.mrf.mxu0
    %514 = vdwg.mxu0
    %515 = vmatpush.bf16.msra.mxu0 %v469
    %516 = vmatpush.bf16.msra.mxu0 %v468
    %517 = vmatpush.bf16.msra.mxu0 %v467
    %518 = vmatpush.bf16.msra.mxu0 %v466
    %519 = vmatpush.bf16.msra.mxu0 %v465
    %520 = vmatpush.bf16.msra.mxu0 %v464
    %521 = vmatpush.bf16.msra.mxu0 %v463
    %522 = vmatpush.bf16.msra.mxu0 %v462
    %523 = vmatmul.bf16.gmra.mxu0 %v71
    %v524 = vpop.f32.mrf.mxu0
    %v525 = vadd.f32 %v512, %v524
    %v526 = vpop.f32.mrf.mxu0
    %527 = vdwg.mxu0
    %528 = vmatpush.bf16.msra.mxu0 %v477
    %529 = vmatpush.bf16.msra.mxu0 %v476
    %530 = vmatpush.bf16.msra.mxu0 %v475
    %531 = vmatpush.bf16.msra.mxu0 %v474
    %532 = vmatpush.bf16.msra.mxu0 %v473
    %533 = vmatpush.bf16.msra.mxu0 %v472
    %534 = vmatpush.bf16.msra.mxu0 %v471
    %535 = vmatpush.bf16.msra.mxu0 %v470
    %536 = vmatmul.bf16.gmra.mxu0 %v72
    %v537 = vpop.f32.mrf.mxu0
    %v538 = vadd.f32 %v525, %v537
    %v539 = vpop.f32.mrf.mxu0
    %540 = vdwg.mxu0
    %v541 = vld [vmem:[%s3] sm:$0x1]
    %v543 = vperm.slane %v541, 0
    %v545 = vadd.f32 %v538, %v543
    %v546 = vmul.f32 %v545, 0.5
    %v547 = vmul.f32 %v545, 0.70710677
    %v548 = vmul.f32 %v547, %v547
    %v549 = vmin.f32 16.0, %v548
    %v550 = vmul.f32 %v549, 2.1237322e-06
    %v551 = vadd.f32 %v550, 0.00028619796
    %v552 = vmul.f32 %v549, %v551
    %v553 = vadd.f32 %v552, 0.0036580483
    %v554 = vmul.f32 %v549, %v553
    %v555 = vadd.f32 %v554, 0.05243302
    %v556 = vmul.f32 %v549, %v555
    %v557 = vadd.f32 %v556, 0.18741608
    %v558 = vmul.f32 %v549, %v557
    %v559 = vadd.f32 %v558, 1.1283791
    %v560 = vmul.f32 %v547, %v559
    %v561 = vmul.f32 %v549, 3.8918573e-05
    %v562 = vadd.f32 %v561, 0.001143296
    %v563 = vmul.f32 %v549, %v562
    %v564 = vadd.f32 %v563, 0.014752088
    %v565 = vmul.f32 %v549, %v564
    %v566 = vadd.f32 %v565, 0.112945676
    %v567 = vmul.f32 %v549, %v566
    %v568 = vadd.f32 %v567, 0.4994258
    %v569 = vmul.f32 %v549, %v568
    %v570 = vadd.f32 %v569, 1.0
    %v571 = vrcp.pop %v570
    %v572 = vmul.f32 %v570, %v571
    %v573 = vsub.f32 1.0, %v572
    %v574 = vmul.f32 %v571, %v573
    %v575 = vadd.f32 %v571, %v574
    %vm576 = vweird.f32 %v570
    %vm577 = vweird.f32 %v571
    %vm578 = vmor %vm576, %vm577
    %v579 = vsel %vm578, %v571, %v575
    %v580 = vand.u32 2147483647, %v570
    %vm581 = vcmp.eq.f32.partialorder %v580, 8.507059e+37
    %v582 = vand.u32 %v570, 2147483648
    %v583 = vor.u32 1.1754944e-38, %v582
    %v584 = vsel %vm581, %v583, %v579
    %v585 = vmul.f32 %v560, %v584
    %v586 = vmin.f32 %v585, 1.0
    %v587 = vmax.f32 %v586, -1.0
    %v588 = vadd.f32 %v587, 1.0
    %v589 = vmul.f32 %v546, %v588
    %v590 = vld [vmem:[%s4] sm:$0x1]
    %v592 = vperm.slane %v590, 0
    %v594 = vmul.f32 %v589, %v592
    %595 = vadd.xlane.f32.xlu0 %v594
    %v596 = vpop.xlane.xlu0 %595
    %s597 = sld [smem:[#allocation2]]
    %v598 = vstv %s597
    %v599 = vadd.f32 %v596, %v598
    %vm600 = vcmask 7168
    %601 = vst.msk [vmem:[%s6] sm:$0xff] %vm600, %v599
    // Predicated region
    $region38: #{tpu_custom_call.1} parent=1 // pred_check
      _
    $region39: #{tpu_custom_call.1} parent=1 // pred_check_branch
      %603 = sbr.rel (0) target = $region41
    $region40: #{tpu_custom_call.1} parent=1 // pred_region
      _
    $region41: #{tpu_custom_call.1} parent=1 // pred_fallthru
      _
    // Predicated region
    $region42: #{tpu_custom_call.1} parent=1 // pred_check
      _
    $region43: #{tpu_custom_call.1} parent=1 // pred_check_branch
      %605 = sbr.rel (0) target = $region45
    $region44: #{tpu_custom_call.1} parent=1 // pred_region
      _
    $region45: #{tpu_custom_call.1} parent=1 // pred_fallthru
      _
    %606 = vsyncpa [#allocation4], 1
    %607 = vsyncpa [#allocation6], 1

</llo_original>
